<compile_context>
chip_gen: v7x
topology: tpu7x:2x2x1
jax: 0.10.0
libtpu: 0.0.40
codegen_flags: <defaults>
</compile_context>

<pallas_src>
import functools

import jax
import jax.numpy as jnp
from jax.experimental import pallas as pl
from jax.experimental.pallas import tpu as pltpu

BN_EPS = 1e-3
NUM_STAT_SLABS = 2  # matches v7x's 2 TensorCores; negligible cost on v5e/v6e (1 TC)


def _round_up(x, m):
    return (x + m - 1) // m * m


def _conv_pool_stats_kernel(rows_ref, w_ref, ypool_ref, stat_ref, *, c_in, c_out):
    """Pass 1: raw conv y, 3x3/s2 max-pool, and per-channel sum / sum-of-squares.

    rows_ref  : (tm, 9*c_in) im2col rows, K ordered (kh, kw, C_in)
    w_ref     : (9*c_in, c_out)
    ypool_ref : (tm, c_out + c_in)   raw (pre-BN) conv output | pooled input
    stat_ref  : (1, 2, c_out)        per-slab accumulator [sum ; sum-of-squares]
    """
    @pl.when(pl.program_id(1) == 0)
    def _():
        stat_ref[...] = jnp.zeros_like(stat_ref)

    p = rows_ref[...]                                                   # (tm, K)
    y = jnp.dot(p, w_ref[...], preferred_element_type=jnp.float32)     # (tm, c_out)

    # Max-pool derived from the same im2col rows: tap t lives in columns
    # [t*c_in, (t+1)*c_in) because K is ordered (kh, kw, C_in).
    pool = p[:, 0:c_in]
    for t in range(1, 9):
        pool = jnp.maximum(pool, p[:, t * c_in:(t + 1) * c_in])

    ypool_ref[...] = jnp.concatenate([y, pool], axis=-1)

    # NOTE: variance is later formed as E[y^2] - E[y]^2; adequate at these
    # activation scales / M, revisit (centered pass) only if tolerances tighten.
    s = jnp.sum(y, axis=0, keepdims=True)        # (1, c_out)
    sq = jnp.sum(y * y, axis=0, keepdims=True)   # (1, c_out)
    stat_ref[...] += jnp.concatenate([s, sq], axis=0)[None, :, :]


def _bn_relu_kernel(ypool_ref, params_ref, out_ref):
    """Pass 2 (in place): out = max(ypool * scale + shift, floor).

    params_ref rows: [scale ; shift ; floor]. Conv columns carry the folded BN
    scale/shift with floor = 0 (ReLU); pool columns carry scale=1, shift=0,
    floor=-inf (pure passthrough).
    """
    t = ypool_ref[...] * params_ref[0:1, :] + params_ref[1:2, :]
    out_ref[...] = jnp.maximum(t, params_ref[2:3, :])


def downsample_forward(x, conv_w, conv_b, bn_gamma, bn_beta, *, tm=1024):
    """x: (N, C_in, H, W) f32 -> (N, C_out + C_in, OH, OW) f32.

    conv_b is accepted for interface parity but intentionally unused: a
    per-channel bias is exactly cancelled by the training-mode BatchNorm mean
    subtraction that immediately follows the conv in this module.
    """
    del conv_b
    N, C_in, H, W = x.shape
    C_out = conv_w.shape[0]
    k, s = 3, 2
    OH = (H - k) // s + 1
    OW = (W - k) // s + 1
    M = N * OH * OW
    K = k * k * C_in
    C_cat = C_out + C_in

    # --- im2col via 9 strided slices (no gather); K ordered (kh, kw, C_in) ---
    taps = []
    for kh in range(k):
        for kw in range(k):
            taps.append(
                x[:, :, kh:kh + s * (OH - 1) + 1:s, kw:kw + s * (OW - 1) + 1:s])
    patches = jnp.stack(taps, axis=0)                    # (9, N, C_in, OH, OW)
    patches = jnp.transpose(patches, (1, 3, 4, 0, 2))    # (N, OH, OW, 9, C_in)
    conv_rows = patches.reshape(M, K)                    # unpadded K = 36

    # Weight -> (K, C_out) with matching (kh, kw, C_in) ordering.
    w_t = jnp.transpose(conv_w, (2, 3, 1, 0)).reshape(K, C_out)

    # --- row tiling: tm multiple of 8; M padded to NUM_STAT_SLABS * tm -------
    tm = max(8, min(_round_up(tm, 8), _round_up(M, 8)))
    M_pad = _round_up(M, NUM_STAT_SLABS * tm)
    nm_inner = M_pad // (NUM_STAT_SLABS * tm)
    rows_p = jnp.pad(conv_rows, ((0, M_pad - M), (0, 0)))   # zero rows -> 0 stats

    # --- pass 1: conv matmul + max-pool + per-channel sum / sum-of-squares ---
    ypool, stats = pl.pallas_call(
        functools.partial(_conv_pool_stats_kernel, c_in=C_in, c_out=C_out),
        out_shape=(
            jax.ShapeDtypeStruct((M_pad, C_cat), jnp.float32),
            jax.ShapeDtypeStruct((NUM_STAT_SLABS, 2, C_out), jnp.float32),
        ),
        grid=(NUM_STAT_SLABS, nm_inner),
        in_specs=[
            pl.BlockSpec((tm, K), lambda c, i: (c * nm_inner + i, 0)),
            pl.BlockSpec((K, C_out), lambda c, i: (0, 0)),
        ],
        out_specs=(
            pl.BlockSpec((tm, C_cat), lambda c, i: (c * nm_inner + i, 0)),
            pl.BlockSpec((1, 2, C_out), lambda c, i: (c, 0, 0)),
        ),
        compiler_params=pltpu.CompilerParams(
            dimension_semantics=("parallel", "arbitrary")),
    )(rows_p, w_t)

    # Reduce the per-core stat slabs and fold BN into per-channel scale/shift.
    stats = jnp.sum(stats, axis=0)                        # (2, C_out)
    mean = stats[0] / M                                   # padded rows added 0
    var = jnp.maximum(stats[1] / M - mean * mean, 0.0)
    scale = bn_gamma * jax.lax.rsqrt(var + BN_EPS)
    shift = bn_beta - mean * scale

    params = jnp.stack([
        jnp.concatenate([scale, jnp.ones((C_in,), jnp.float32)]),
        jnp.concatenate([shift, jnp.zeros((C_in,), jnp.float32)]),
        jnp.concatenate([jnp.zeros((C_out,), jnp.float32),
                         jnp.full((C_in,), -jnp.inf, jnp.float32)]),
    ], axis=0)                                            # (3, C_cat)

    # --- pass 2: folded BN + ReLU (conv cols) / passthrough (pool cols) ------
    nm = M_pad // tm
    out_flat = pl.pallas_call(
        _bn_relu_kernel,
        out_shape=jax.ShapeDtypeStruct((M_pad, C_cat), jnp.float32),
        grid=(nm,),
        in_specs=[
            pl.BlockSpec((tm, C_cat), lambda i: (i, 0)),
            pl.BlockSpec((3, C_cat), lambda i: (0, 0)),
        ],
        out_specs=pl.BlockSpec((tm, C_cat), lambda i: (i, 0)),
        input_output_aliases={0: 0},   # update ypool in place
        compiler_params=pltpu.CompilerParams(
            dimension_semantics=("parallel",)),
    )(ypool, params)

    out = out_flat[:M].reshape(N, OH, OW, C_cat)
    return jnp.transpose(out, (0, 3, 1, 2))


def downsample_reference(x, conv_w, conv_b, bn_gamma, bn_beta):
    """Pure-JAX reference mirroring the PyTorch forward (training-mode BN)."""
    y = jax.lax.conv_general_dilated(
        x, conv_w, window_strides=(2, 2), padding="VALID",
        dimension_numbers=("NCHW", "OIHW", "NCHW"))
    y = y + conv_b[None, :, None, None]
    mu = jnp.mean(y, axis=(0, 2, 3), keepdims=True)
    var = jnp.mean((y - mu) ** 2, axis=(0, 2, 3), keepdims=True)
    y = (y - mu) * jax.lax.rsqrt(var + BN_EPS)
    y = y * bn_gamma[None, :, None, None] + bn_beta[None, :, None, None]
    conv_out = jnp.maximum(y, 0.0)
    pool = jax.lax.reduce_window(
        x, -jnp.inf, jax.lax.max,
        window_dimensions=(1, 1, 3, 3), window_strides=(1, 1, 2, 2),
        padding="VALID")
    return jnp.concatenate([conv_out, pool], axis=1)


if __name__ == "__main__":
    key = jax.random.PRNGKey(0)
    k_x, k_w, k_b, k_g, k_bt = jax.random.split(key, 5)

    N, C_in, H, W = 2, 4, 16, 16
    C_out = 8

    x = jax.random.normal(k_x, (N, C_in, H, W), dtype=jnp.float32)
    conv_w = 0.1 * jax.random.normal(k_w, (C_out, C_in, 3, 3), dtype=jnp.float32)
    conv_b = 0.1 * jax.random.normal(k_b, (C_out,), dtype=jnp.float32)
    bn_gamma = 1.0 + 0.05 * jax.random.normal(k_g, (C_out,), dtype=jnp.float32)
    bn_beta = 0.05 * jax.random.normal(k_bt, (C_out,), dtype=jnp.float32)

    # tm=32 so the toy M=98 exercises both grid axes of pass 1 (2 slabs x 2
    # inner steps, with a partially padded last tile) and a 4-step pass 2.
    out = downsample_forward(x, conv_w, conv_b, bn_gamma, bn_beta, tm=32)
    out = jax.block_until_ready(out)

    ref = downsample_reference(x, conv_w, conv_b, bn_gamma, bn_beta)
    ref = jax.block_until_ready(ref)

    assert out.shape == (N, C_out + C_in, 7, 7), out.shape
    assert jnp.allclose(out, ref, rtol=5e-3, atol=5e-3), float(jnp.max(jnp.abs(out - ref)))

    print("KERNEL_OK")
</pallas_src>

<mosaic_0001>
module attributes {stable_mosaic.version = 11 : i64} {
  func.func @_conv_pool_stats_kernel(%arg0: i32, %arg1: i32, %arg2: memref<32x36xf32, #tpu.memory_space<vmem>>, %arg3: memref<36x8xf32, #tpu.memory_space<vmem>>, %arg4: memref<32x12xf32, #tpu.memory_space<vmem>>, %arg5: memref<1x2x8xf32, #tpu.memory_space<vmem>>) attributes {dimension_semantics = [#tpu.dimension_semantics<parallel>, #tpu.dimension_semantics<arbitrary>], iteration_bounds = array<i64: 2, 2>, scalar_prefetch = 0 : i64, scratch_operands = 0 : i64, tpu.core_type = #tpu.core_type<tc>, window_params = [{transform_indices = @transform_0, window_bounds = array<i64: 32, 36>}, {pipeline_mode = #tpu.pipeline_mode<synchronous>, transform_indices = @transform_1, window_bounds = array<i64: 36, 8>}, {transform_indices = @transform_2, window_bounds = array<i64: 32, 12>}, {transform_indices = @transform_3, window_bounds = array<i64: 1, 2, 8>}]} {
    %c0_i32 = arith.constant 0 : i32
    %0 = arith.cmpi eq, %arg1, %c0_i32 : i32
    %1 = arith.extui %0 : i1 to i32
    %c0_i32_0 = arith.constant 0 : i32
    %2 = arith.cmpi ne, %1, %c0_i32_0 : i32
    scf.if %2 {
      %cst_14 = arith.constant 0.000000e+00 : f32
      %35 = vector.broadcast %cst_14 : f32 to vector<1x2x8xf32>
      %c0_15 = arith.constant 0 : index
      %c0_16 = arith.constant 0 : index
      %c0_17 = arith.constant 0 : index
      %36 = vector.load %arg5[%c0_15, %c0_16, %c0_17] : memref<1x2x8xf32, #tpu.memory_space<vmem>>, vector<1x2x8xf32>
      tpu.vector_store %arg5[%c0_15, %c0_16, %c0_17], %35 {strides = array<i32>} : memref<1x2x8xf32, #tpu.memory_space<vmem>>, vector<1x2x8xf32>,
    } else {
    }
    %c0 = arith.constant 0 : index
    %c0_1 = arith.constant 0 : index
    %3 = vector.load %arg2[%c0, %c0_1] : memref<32x36xf32, #tpu.memory_space<vmem>>, vector<32x36xf32>
    %c0_2 = arith.constant 0 : index
    %c0_3 = arith.constant 0 : index
    %4 = vector.load %arg3[%c0_2, %c0_3] : memref<36x8xf32, #tpu.memory_space<vmem>>, vector<36x8xf32>
    %cst = arith.constant dense<0.000000e+00> : vector<32x8xf32>
    %5 = tpu.matmul %3, %4, %cst {dimension_numbers = #tpu.dot_dimension_numbers<[1], [0], [0], [1], [0, 0, 1, 1], [], []>} : vector<32x36xf32>, vector<36x8xf32>, vector<32x8xf32> -> vector<32x8xf32>
    %6 = vector.extract_strided_slice %3 {offsets = [0, 0], sizes = [32, 4], strides = [1, 1]} : vector<32x36xf32> to vector<32x4xf32>
    %7 = vector.extract_strided_slice %3 {offsets = [0, 4], sizes = [32, 4], strides = [1, 1]} : vector<32x36xf32> to vector<32x4xf32>
    %8 = arith.maximumf %6, %7 : vector<32x4xf32>
    %9 = vector.extract_strided_slice %3 {offsets = [0, 8], sizes = [32, 4], strides = [1, 1]} : vector<32x36xf32> to vector<32x4xf32>
    %10 = arith.maximumf %8, %9 : vector<32x4xf32>
    %11 = vector.extract_strided_slice %3 {offsets = [0, 12], sizes = [32, 4], strides = [1, 1]} : vector<32x36xf32> to vector<32x4xf32>
    %12 = arith.maximumf %10, %11 : vector<32x4xf32>
    %13 = vector.extract_strided_slice %3 {offsets = [0, 16], sizes = [32, 4], strides = [1, 1]} : vector<32x36xf32> to vector<32x4xf32>
    %14 = arith.maximumf %12, %13 : vector<32x4xf32>
    %15 = vector.extract_strided_slice %3 {offsets = [0, 20], sizes = [32, 4], strides = [1, 1]} : vector<32x36xf32> to vector<32x4xf32>
    %16 = arith.maximumf %14, %15 : vector<32x4xf32>
    %17 = vector.extract_strided_slice %3 {offsets = [0, 24], sizes = [32, 4], strides = [1, 1]} : vector<32x36xf32> to vector<32x4xf32>
    %18 = arith.maximumf %16, %17 : vector<32x4xf32>
    %19 = vector.extract_strided_slice %3 {offsets = [0, 28], sizes = [32, 4], strides = [1, 1]} : vector<32x36xf32> to vector<32x4xf32>
    %20 = arith.maximumf %18, %19 : vector<32x4xf32>
    %21 = vector.extract_strided_slice %3 {offsets = [0, 32], sizes = [32, 4], strides = [1, 1]} : vector<32x36xf32> to vector<32x4xf32>
    %22 = arith.maximumf %20, %21 : vector<32x4xf32>
    %23 = tpu.concatenate %5, %22 in 1 : vector<32x8xf32>, vector<32x4xf32> -> vector<32x12xf32>
    %c0_4 = arith.constant 0 : index
    %c0_5 = arith.constant 0 : index
    %24 = vector.load %arg4[%c0_4, %c0_5] : memref<32x12xf32, #tpu.memory_space<vmem>>, vector<32x12xf32>
    tpu.vector_store %arg4[%c0_4, %c0_5], %23 {strides = array<i32>} : memref<32x12xf32, #tpu.memory_space<vmem>>, vector<32x12xf32>,
    %cst_6 = arith.constant dense<0.000000e+00> : vector<8xf32>
    %25 = vector.multi_reduction <add>, %5, %cst_6 [0] : vector<32x8xf32> to vector<8xf32>
    %26 = vector.shape_cast %25 : vector<8xf32> to vector<1x8xf32>
    %27 = arith.mulf %5, %5 : vector<32x8xf32>
    %cst_7 = arith.constant dense<0.000000e+00> : vector<8xf32>
    %28 = vector.multi_reduction <add>, %27, %cst_7 [0] : vector<32x8xf32> to vector<8xf32>
    %29 = vector.shape_cast %28 : vector<8xf32> to vector<1x8xf32>
    %c0_8 = arith.constant 0 : index
    %c0_9 = arith.constant 0 : index
    %c0_10 = arith.constant 0 : index
    %30 = vector.load %arg5[%c0_8, %c0_9, %c0_10] : memref<1x2x8xf32, #tpu.memory_space<vmem>>, vector<1x2x8xf32>
    %31 = tpu.concatenate %26, %29 in 0 : vector<1x8xf32>, vector<1x8xf32> -> vector<2x8xf32>
    %32 = vector.shape_cast %31 : vector<2x8xf32> to vector<1x2x8xf32>
    %33 = arith.addf %30, %32 : vector<1x2x8xf32>
    %c0_11 = arith.constant 0 : index
    %c0_12 = arith.constant 0 : index
    %c0_13 = arith.constant 0 : index
    %34 = vector.load %arg5[%c0_11, %c0_12, %c0_13] : memref<1x2x8xf32, #tpu.memory_space<vmem>>, vector<1x2x8xf32>
    tpu.vector_store %arg5[%c0_11, %c0_12, %c0_13], %33 {strides = array<i32>} : memref<1x2x8xf32, #tpu.memory_space<vmem>>, vector<1x2x8xf32>,
    return
  }
  func.func @transform_0(%arg0: i32, %arg1: i32) -> (i32, i32) {
    %c2_i32 = arith.constant 2 : i32
    %0 = arith.muli %arg0, %c2_i32 : i32
    %1 = arith.addi %0, %arg1 : i32
    %c0_i32 = arith.constant 0 : i32
    %c0_i32_0 = arith.constant 0 : i32
    return %1, %c0_i32 : i32, i32
  }
  func.func @transform_1(%arg0: i32, %arg1: i32) -> (i32, i32) {
    %c0_i32 = arith.constant 0 : i32
    %c0_i32_0 = arith.constant 0 : i32
    %c0_i32_1 = arith.constant 0 : i32
    return %c0_i32, %c0_i32_0 : i32, i32
  }
  func.func @transform_2(%arg0: i32, %arg1: i32) -> (i32, i32) {
    %c2_i32 = arith.constant 2 : i32
    %0 = arith.muli %arg0, %c2_i32 : i32
    %1 = arith.addi %0, %arg1 : i32
    %c0_i32 = arith.constant 0 : i32
    %c0_i32_0 = arith.constant 0 : i32
    return %1, %c0_i32 : i32, i32
  }
  func.func @transform_3(%arg0: i32, %arg1: i32) -> (i32, i32, i32) {
    %c0_i32 = arith.constant 0 : i32
    %c0_i32_0 = arith.constant 0 : i32
    %c0_i32_1 = arith.constant 0 : i32
    return %arg0, %c0_i32, %c0_i32_0 : i32, i32, i32
  }
}

</mosaic_0001>

<llo_original>
// kernel: tpu_custom_call.1
$region0: #{tpu_custom_call.1}
  #allocation0 [shape = 'u32[]', space=smem, size = 0x4, offset = 0x4, fixed_abs, tag = 'smem constant byte address 0x4 - core index']
  #allocation1 [shape = 'u32[144,128]{1,0:T(1,128)}', space=vmem, size = 0x12000, scoped, tag = 'internal scratch']
  %s0 = inlined_call_operand.vmem [shape: f32[128,36], index: 0, kind: input, shape index: {}]
  %s1 = inlined_call_operand.vmem [shape: f32[36,8], index: 1, kind: input, shape index: {}]
  %s2 = inlined_call_operand.vmem [shape: f32[128,12], index: 2, kind: output, shape index: {0}]
  %s3 = inlined_call_operand.hbm [shape: f32[2,2,8], index: 3, kind: output, shape index: {1}]
  %4 = xla_tuple %s2, %s3
  %s5 = sld [smem:[#allocation0]]
  $region53: #{tpu_custom_call.1} parent=0
    _
  %s7 = ssub.s32 1, %s5
  %s8 = scalar_select 0, %s7, %s5
  $region1: #{tpu_custom_call.1} parent=0
    #allocation2 [shape = 'u8[2048]{0}', space=vmem, size = 0x800, scoped, tag = 'output window, operand 1']
    #allocation3 [shape = 's32[2]{0}', space=sflag, size = 0x8, scoped, tag = 'scoped memory for tpu_custom_call.1']
    %9 = vsyncpa [#allocation3], 0
    %s10 = scalar_lea.sflag [#allocation3], 1
    %11 = vsyncpa %s10, 0
    loop: start=0, step=1, limit=6
    $region2: #{tpu_custom_call.1} parent=1 // loop_pre_header
      _
    $region3: #{tpu_custom_call.1} parent=1 // loop_header
      %s13 = sphi 0, %s17
      %p14 = scmp.ge.s32.totalorder %s13, 6
      %s20 = sphi 0, %s32
      %s21 = sphi 0, %s28
      %s22 = sphi 0, %s20
      %s23 = sphi 0, %s21
      %s24 = sphi 0, %s22
      %s25 = sphi 0, %s23
      %s39 = sphi 0, %s41
      %s42 = sphi 0, %s39
      %s43 = sphi 0, %s42
      %s59 = sphi 0, %s43
      %s63 = sphi 0, %s63
      %s65 = sphi 0, %s63
      %s66 = sphi 0, %s65
      %s80 = sphi 0, %s66
      %s90 = sphi 0, %s92
      %s93 = sphi 0, %s90
      %s94 = sphi 0, %s93
      %s110 = sphi 0, %s94
      %s116 = sphi 0, %s118
      %s119 = sphi 0, %s116
      %s120 = sphi 0, %s119
      %s136 = sphi 0, %s120
    $region4: #{tpu_custom_call.1} parent=1 // loop_header_branch
      %16 = sbr.rel (%p14) target = $region8
    $region5: #{tpu_custom_call.1} parent=1 // loop_body
      %s18 = ssub.s32 %s13, 1
      %s19 = ssub.s32 %s13, 2
      %s26 = sadd.s32 1, %s21
      %p27 = scmp.ge.s32.totalorder %s26, 2
      %s28 = scalar_select %p27, 0, %s26
      %s29 = sadd.s32 1, %s20
      %s30 = scalar_select %p27, %s29, %s20
      %p31 = scmp.ge.s32.totalorder %s30, 2
      %s32 = scalar_select %p31, 0, %s30
      %s33 = smul.u32 %s20, 2
      %s34 = sadd.s32 %s33, %s21
      %s35 = smul.u32 %s32, 2
      %s36 = sadd.s32 %s35, %s28
      %s37 = ssub.s32 %s34, %s36
      %p38 = scmp.eq.s32.totalorder %s37, 0
      %s40 = sadd.s32 %s39, 1
      %s41 = scalar_select %p38, %s39, %s40
      %p44 = pneg %p38
      %p45 = scmp.eq.s32.totalorder %s13, 3
      %p46 = por %p44, %p45
      %p47 = scmp.ne.s32.totalorder %s39, %s42
      %p48 = scmp.eq.s32.totalorder %s13, 0
      %p49 = por %p47, %p48
      %p50 = scmp.ne.s32.totalorder %s39, %s42
      %p51 = scmp.eq.s32.totalorder %s18, 3
      %p52 = por %p50, %p51
      %p53 = scmp.ne.s32.totalorder %s42, %s43
      %p54 = scmp.eq.s32.totalorder %s18, 0
      %p55 = por %p53, %p54
      %p56 = scmp.ne.s32.totalorder %s42, %s43
      %p57 = scmp.eq.s32.totalorder %s19, 3
      %p58 = por %p56, %p57
      %p60 = scmp.ne.s32.totalorder %s43, %s59
      %p61 = scmp.eq.s32.totalorder %s19, 0
      %p62 = por %p60, %p61
      %s64 = sadd.s32 %s63, 1
      %p67 = scmp.eq.s32.totalorder %s13, 3
      %p68 = scmp.ne.s32.totalorder %s63, %s65
      %p69 = scmp.eq.s32.totalorder %s13, 0
      %p70 = por %p68, %p69
      %p71 = scmp.ne.s32.totalorder %s63, %s65
      %p72 = scmp.eq.s32.totalorder %s18, 3
      %p73 = por %p71, %p72
      %p74 = scmp.ne.s32.totalorder %s65, %s66
      %p75 = scmp.eq.s32.totalorder %s18, 0
      %p76 = por %p74, %p75
      %p77 = scmp.ne.s32.totalorder %s65, %s66
      %p78 = scmp.eq.s32.totalorder %s19, 3
      %p79 = por %p77, %p78
      %p81 = scmp.ne.s32.totalorder %s66, %s80
      %p82 = scmp.eq.s32.totalorder %s19, 0
      %p83 = por %p81, %p82
      %s84 = smul.u32 %s20, 2
      %s85 = sadd.s32 %s84, %s21
      %s86 = smul.u32 %s32, 2
      %s87 = sadd.s32 %s86, %s28
      %s88 = ssub.s32 %s85, %s87
      %p89 = scmp.eq.s32.totalorder %s88, 0
      %s91 = sadd.s32 %s90, 1
      %s92 = scalar_select %p89, %s90, %s91
      %p95 = pneg %p89
      %p96 = scmp.eq.s32.totalorder %s13, 3
      %p97 = por %p95, %p96
      %p98 = scmp.ne.s32.totalorder %s90, %s93
      %p99 = scmp.eq.s32.totalorder %s13, 0
      %p100 = por %p98, %p99
      %p101 = scmp.ne.s32.totalorder %s90, %s93
      %p102 = scmp.eq.s32.totalorder %s18, 3
      %p103 = por %p101, %p102
      %p104 = scmp.ne.s32.totalorder %s93, %s94
      %p105 = scmp.eq.s32.totalorder %s18, 0
      %p106 = por %p104, %p105
      %p107 = scmp.ne.s32.totalorder %s93, %s94
      %p108 = scmp.eq.s32.totalorder %s19, 3
      %p109 = por %p107, %p108
      %p111 = scmp.ne.s32.totalorder %s94, %s110
      %p112 = scmp.eq.s32.totalorder %s19, 0
      %p113 = por %p111, %p112
      %s114 = ssub.s32 %s20, %s32
      %p115 = scmp.eq.s32.totalorder %s114, 0
      %s117 = sadd.s32 %s116, 1
      %s118 = scalar_select %p115, %s116, %s117
      %p121 = pneg %p115
      %p122 = scmp.eq.s32.totalorder %s13, 3
      %p123 = por %p121, %p122
      %p124 = scmp.ne.s32.totalorder %s116, %s119
      %p125 = scmp.eq.s32.totalorder %s13, 0
      %p126 = por %p124, %p125
      %p127 = scmp.ne.s32.totalorder %s116, %s119
      %p128 = scmp.eq.s32.totalorder %s18, 3
      %p129 = por %p127, %p128
      %p130 = scmp.ne.s32.totalorder %s119, %s120
      %p131 = scmp.eq.s32.totalorder %s18, 0
      %p132 = por %p130, %p131
      %p133 = scmp.ne.s32.totalorder %s119, %s120
      %p134 = scmp.eq.s32.totalorder %s19, 3
      %p135 = por %p133, %p134
      %p137 = scmp.ne.s32.totalorder %s120, %s136
      %p138 = scmp.eq.s32.totalorder %s19, 0
      %p139 = por %p137, %p138
      %p140 = scmp.le.s32.totalorder 1, %s13
      %p141 = scmp.lt.s32.totalorder %s13, 5
      %p142 = pnand %p140, %p141
      %p143 = pneg %p142
      // Predicated region
      $region9: #{tpu_custom_call.1} parent=5 // pred_check
        _
      $region10: #{tpu_custom_call.1} parent=5 // pred_check_branch
        %145 = sbr.rel (%p142) target = $region12
      $region11: #{tpu_custom_call.1} parent=5 // pred_region
        %s146 = ssub.s32 %s13, 1
        // Predicated region
        $region13: #{tpu_custom_call.1} parent=11 // pred_check
          %p147 = pneg %p76
        $region14: #{tpu_custom_call.1} parent=11 // pred_check_branch
          %149 = sbr.rel (%p147) target = $region16
        $region15: #{tpu_custom_call.1} parent=11 // pred_region
          _
        $region16: #{tpu_custom_call.1} parent=11 // pred_fallthru
          _
      $region12: #{tpu_custom_call.1} parent=5 // pred_fallthru
        _
      %p150 = scmp.lt.s32.totalorder %s13, 4
      // Predicated region
      $region17: #{tpu_custom_call.1} parent=5 // pred_check
        %p151 = pneg %p150
      $region18: #{tpu_custom_call.1} parent=5 // pred_check_branch
        %153 = sbr.rel (%p151) target = $region20
      $region19: #{tpu_custom_call.1} parent=5 // pred_region
        // Predicated region
        $region21: #{tpu_custom_call.1} parent=19 // pred_check
          %p154 = pneg %p49
        $region22: #{tpu_custom_call.1} parent=19 // pred_check_branch
          %156 = sbr.rel (%p154) target = $region24
        $region23: #{tpu_custom_call.1} parent=19 // pred_region
          %s157 = smul.u32 %s20, 2
          %s158 = sadd.s32 %s157, %s21
          %s159 = smul.u32 4, %s158
          %p160 = scmp.lt.s32.totalorder %s159, 15
          %s161 = scalar_select %p160, %s159, 15
          %s162 = smul.addr %s161, 8
          %s163 = scalar_lea.vmem %s0, %s162
          %s164 = smul.u32 %s20, 2
          %s165 = sadd.s32 %s164, %s21
          %s166 = smul.u32 4, %s165
        $region24: #{tpu_custom_call.1} parent=19 // pred_fallthru
          _
      $region20: #{tpu_custom_call.1} parent=5 // pred_fallthru
        _
      %p167 = scmp.le.s32.totalorder 1, %s13
      %p168 = scmp.lt.s32.totalorder %s13, 5
      %p169 = pnand %p167, %p168
      %p170 = pneg %p169
      // Predicated region
      $region25: #{tpu_custom_call.1} parent=5 // pred_check
        _
      $region26: #{tpu_custom_call.1} parent=5 // pred_check_branch
        %172 = sbr.rel (%p169) target = $region28
      $region27: #{tpu_custom_call.1} parent=5 // pred_region
        %s173 = ssub.s32 %s13, 1
        %s174 = smul.u32 %s22, 2
        %s175 = sadd.s32 %s174, %s23
        %s176 = smul.u32 4, %s175
        %p177 = scmp.lt.s32.totalorder %s176, 15
        %s178 = scalar_select %p177, %s176, 15
        %s179 = smul.addr %s178, 8
        %s180 = scalar_lea.vmem %s0, %s179
        %p181 = pneg %p55
        %p182 = pneg %p52
        %p183 = pneg %p76
        %p184 = pneg %p73
        %p185 = pneg %p106
        %p186 = pneg %p103
        %s187 = smul.u32 %s22, 2
        %s188 = sadd.s32 %s187, %s23
        %s189 = smul.u32 4, %s188
        %p190 = scmp.lt.s32.totalorder %s189, 15
        %s191 = scalar_select %p190, %s189, 15
        %s192 = smul.addr %s191, 8
        %s193 = scalar_lea.vmem %s2, %s192
        %p194 = pneg %p132
        %p195 = pneg %p129
        %s196 = sand.u32 %s119, 1
        %s197 = scalar_lea.sflag [#allocation3], %s196
        %s198 = sand.u32 %s119, 1
        %s199 = smul.addr %s198, 2
        %s200 = scalar_lea.vmem [#allocation2], %s199
        %s201 = smul.u32 %s22, 2
        %s202 = sadd.s32 %s201, %s23
        %s203 = smul.u32 4, %s202
        %p204 = scmp.lt.s32.totalorder %s203, 15
        %s205 = scalar_select %p204, %s203, 15
        %s206 = smul.addr %s205, 8
        %s207 = scalar_lea.vmem %s0, %s206
        %s208 = smul.u32 %s22, 2
        %s209 = sadd.s32 %s208, %s23
        %s210 = smul.u32 4, %s209
        %s211 = smul.u32 %s22, 2
        %s212 = sadd.s32 %s211, %s23
        %s213 = smul.u32 4, %s212
        %p214 = scmp.lt.s32.totalorder %s213, 15
        %s215 = scalar_select %p214, %s213, 15
        %s216 = smul.addr %s215, 8
        %s217 = scalar_lea.vmem %s2, %s216
        %s218 = smul.u32 %s22, 2
        %s219 = sadd.s32 %s218, %s23
        %s220 = smul.u32 4, %s219
        %p221 = scmp.eq.s32.totalorder %s23, 0
        // Predicated region
        $region29: #{tpu_custom_call.1} parent=27 // pred_check
          %p222 = pneg %p221
        $region30: #{tpu_custom_call.1} parent=27 // pred_check_branch
          %224 = sbr.rel (%p222) target = $region32
        $region31: #{tpu_custom_call.1} parent=27 // pred_region
          %vm225 = vcmask 58368
          %226 = vst.msk [vmem:[%s200] sm:$0x3] %vm225, 0.0
        $region32: #{tpu_custom_call.1} parent=27 // pred_fallthru
          _
        %v227 = vld [vmem:[%s207] sm:$0xff]
        %v228 = vld [vmem:[%s207 + $0x8] sm:$0xff]
        %v229 = vld [vmem:[%s207 + $0x10] sm:$0xff]
        %v230 = vld [vmem:[%s207 + $0x18] sm:$0xff]
        %v231 = vld [vmem:[%s1] sm:$0xff]
        %v232 = vld [vmem:[%s1 + $0x8] sm:$0xff]
        %v233 = vld [vmem:[%s1 + $0x10] sm:$0xff]
        %v234 = vld [vmem:[%s1 + $0x18] sm:$0xff]
        %v235 = vld [vmem:[%s1 + $0x20] sm:$0xf]
        %vm236 = vcmask 293888
        %v238 = vsel %vm236, %v227, 0
        %v241 = vsel %vm236, %v228, 0
        %v244 = vsel %vm236, %v229, 0
        %v247 = vsel %vm236, %v230, 0
        %vm249 = vcmask 1043456
        %v251 = vsel %vm249, %v235, 0
        %253 = vmatprep.subr.mxu0 0.0
        %254 = vmatpush1.msra.mxu0 %v231
        %255 = vmatprep.subr.mxu0 0.0
        %256 = vmatpush1.msra.mxu0 %v232
        %257 = vmatprep.subr.mxu0 0.0
        %258 = vmatpush1.msra.mxu0 %v233
        %259 = vmatprep.subr.mxu0 0.0
        %260 = vmatpush1.msra.mxu0 %v234
        %261 = vmatprep.subr.mxu0 0.0
        %262 = vmatpush1.msra.mxu0 %v251
        %263 = vmatprep.subr.mxu0 0.0
        %264 = vmatpush1.msra.mxu0 0.0
        %265 = vmatprep.subr.mxu0 0.0
        %266 = vmatpush1.msra.mxu0 0.0
        %267 = vmatprep.subr.mxu0 0.0
        %268 = vmatpush1.msra.mxu0 0.0
        %269 = vmatprep.subr.mxu0 0.0
        %270 = vmatpush1.msra.mxu0 0.0
        %271 = vmatprep.subr.mxu0 0.0
        %272 = vmatpush1.msra.mxu0 0.0
        %273 = vmatprep.subr.mxu0 0.0
        %274 = vmatpush1.msra.mxu0 0.0
        %275 = vmatprep.subr.mxu0 0.0
        %276 = vmatpush1.msra.mxu0 0.0
        %277 = vmatprep.subr.mxu0 0.0
        %278 = vmatpush1.msra.mxu0 0.0
        %279 = vmatprep.subr.mxu0 0.0
        %280 = vmatpush1.msra.mxu0 0.0
        %281 = vmatprep.subr.mxu0 0.0
        %282 = vmatpush1.msra.mxu0 0.0
        %283 = vmatprep.subr.mxu0 0.0
        %284 = vmatpush1.msra.mxu0 0.0
        %285 = vmatprep.subr.mxu0 0.0
        %286 = vmatpush1.msra.mxu0 0.0
        %287 = vmatprep.subr.mxu0 0.0
        %288 = vmatpush1.msra.mxu0 0.0
        %289 = vmatprep.subr.mxu0 0.0
        %290 = vmatpush1.msra.mxu0 0.0
        %291 = vmatprep.subr.mxu0 0.0
        %292 = vmatpush1.msra.mxu0 0.0
        %293 = vmatprep.subr.mxu0 0.0
        %294 = vmatpush1.msra.mxu0 0.0
        %295 = vmatprep.subr.mxu0 0.0
        %296 = vmatpush1.msra.mxu0 0.0
        %297 = vmatprep.subr.mxu0 0.0
        %298 = vmatpush1.msra.mxu0 0.0
        %299 = vmatprep.subr.mxu0 0.0
        %300 = vmatpush1.msra.mxu0 0.0
        %301 = vmatprep.subr.mxu0 0.0
        %302 = vmatpush1.msra.mxu0 0.0
        %303 = vmatprep.subr.mxu0 0.0
        %304 = vmatpush1.msra.mxu0 0.0
        %305 = vmatprep.subr.mxu0 0.0
        %306 = vmatpush1.msra.mxu0 0.0
        %307 = vmatprep.subr.mxu0 0.0
        %308 = vmatpush1.msra.mxu0 0.0
        %309 = vmatprep.subr.mxu0 0.0
        %310 = vmatpush1.msra.mxu0 0.0
        %311 = vmatprep.subr.mxu0 0.0
        %312 = vmatpush1.msra.mxu0 0.0
        %313 = vmatprep.subr.mxu0 0.0
        %314 = vmatpush1.msra.mxu0 0.0
        %315 = vmatprep.subr.mxu0 0.0
        %316 = vmatpush1.msra.mxu0 0.0
        %317 = vmatprep.mubr.f32.mxu0 0.0
        %318 = vmatmul.mubr.f32.gmra.mrb[0].mxu0 %v238
        %v319 = vpop.f32.mrb[0].mxu0
        %v320 = vadd.f32 0.0, %v319
        %v321 = vpop.f32.mrb[0].mxu0
        %322 = vmatprep.mubr.f32.mxu0 0.0
        %323 = vmatmul.mubr.f32.gmra.mrb[0].mxu0 %v241
        %v324 = vpop.f32.mrb[0].mxu0
        %v325 = vadd.f32 0.0, %v324
        %v326 = vpop.f32.mrb[0].mxu0
        %327 = vmatprep.mubr.f32.mxu0 0.0
        %328 = vmatmul.mubr.f32.gmra.mrb[0].mxu0 %v244
        %v329 = vpop.f32.mrb[0].mxu0
        %v330 = vadd.f32 0.0, %v329
        %v331 = vpop.f32.mrb[0].mxu0
        %332 = vmatprep.mubr.f32.mxu0 0.0
        %333 = vmatmul.mubr.f32.gmra.mrb[0].mxu0 %v247
        %v334 = vpop.f32.mrb[0].mxu0
        %v335 = vadd.f32 0.0, %v334
        %v336 = vpop.f32.mrb[0].mxu0
        %337 = vdwg.mxu0
        %338 = vrot.lane.b32.xlu0 %v227, 124
        %v339 = vpop.permute.xlu0 %338
        %340 = vrot.lane.b32.xlu0 %v228, 124
        %v341 = vpop.permute.xlu0 %340
        %342 = vrot.lane.b32.xlu0 %v229, 124
        %v343 = vpop.permute.xlu0 %342
        %344 = vrot.lane.b32.xlu0 %v230, 124
        %v345 = vpop.permute.xlu0 %344
        %v350 = vmax.f32 %v227, %v339
        %v351 = vmax.f32 %v228, %v341
        %v352 = vmax.f32 %v229, %v343
        %v353 = vmax.f32 %v230, %v345
        %354 = vrot.lane.b32.xlu0 %v227, 120
        %v355 = vpop.permute.xlu0 %354
        %356 = vrot.lane.b32.xlu0 %v228, 120
        %v357 = vpop.permute.xlu0 %356
        %358 = vrot.lane.b32.xlu0 %v229, 120
        %v359 = vpop.permute.xlu0 %358
        %360 = vrot.lane.b32.xlu0 %v230, 120
        %v361 = vpop.permute.xlu0 %360
        %v366 = vmax.f32 %v350, %v355
        %v367 = vmax.f32 %v351, %v357
        %v368 = vmax.f32 %v352, %v359
        %v369 = vmax.f32 %v353, %v361
        %370 = vrot.lane.b32.xlu0 %v227, 116
        %v371 = vpop.permute.xlu0 %370
        %372 = vrot.lane.b32.xlu0 %v228, 116
        %v373 = vpop.permute.xlu0 %372
        %374 = vrot.lane.b32.xlu0 %v229, 116
        %v375 = vpop.permute.xlu0 %374
        %376 = vrot.lane.b32.xlu0 %v230, 116
        %v377 = vpop.permute.xlu0 %376
        %v382 = vmax.f32 %v366, %v371
        %v383 = vmax.f32 %v367, %v373
        %v384 = vmax.f32 %v368, %v375
        %v385 = vmax.f32 %v369, %v377
        %386 = vrot.lane.b32.xlu0 %v227, 112
        %v387 = vpop.permute.xlu0 %386
        %388 = vrot.lane.b32.xlu0 %v228, 112
        %v389 = vpop.permute.xlu0 %388
        %390 = vrot.lane.b32.xlu0 %v229, 112
        %v391 = vpop.permute.xlu0 %390
        %392 = vrot.lane.b32.xlu0 %v230, 112
        %v393 = vpop.permute.xlu0 %392
        %v398 = vmax.f32 %v382, %v387
        %v399 = vmax.f32 %v383, %v389
        %v400 = vmax.f32 %v384, %v391
        %v401 = vmax.f32 %v385, %v393
        %402 = vrot.lane.b32.xlu0 %v227, 108
        %v403 = vpop.permute.xlu0 %402
        %404 = vrot.lane.b32.xlu0 %v228, 108
        %v405 = vpop.permute.xlu0 %404
        %406 = vrot.lane.b32.xlu0 %v229, 108
        %v407 = vpop.permute.xlu0 %406
        %408 = vrot.lane.b32.xlu0 %v230, 108
        %v409 = vpop.permute.xlu0 %408
        %v414 = vmax.f32 %v398, %v403
        %v415 = vmax.f32 %v399, %v405
        %v416 = vmax.f32 %v400, %v407
        %v417 = vmax.f32 %v401, %v409
        %418 = vrot.lane.b32.xlu0 %v227, 104
        %v419 = vpop.permute.xlu0 %418
        %420 = vrot.lane.b32.xlu0 %v228, 104
        %v421 = vpop.permute.xlu0 %420
        %422 = vrot.lane.b32.xlu0 %v229, 104
        %v423 = vpop.permute.xlu0 %422
        %424 = vrot.lane.b32.xlu0 %v230, 104
        %v425 = vpop.permute.xlu0 %424
        %v430 = vmax.f32 %v414, %v419
        %v431 = vmax.f32 %v415, %v421
        %v432 = vmax.f32 %v416, %v423
        %v433 = vmax.f32 %v417, %v425
        %434 = vrot.lane.b32.xlu0 %v227, 100
        %v435 = vpop.permute.xlu0 %434
        %436 = vrot.lane.b32.xlu0 %v228, 100
        %v437 = vpop.permute.xlu0 %436
        %438 = vrot.lane.b32.xlu0 %v229, 100
        %v439 = vpop.permute.xlu0 %438
        %440 = vrot.lane.b32.xlu0 %v230, 100
        %v441 = vpop.permute.xlu0 %440
        %v446 = vmax.f32 %v430, %v435
        %v447 = vmax.f32 %v431, %v437
        %v448 = vmax.f32 %v432, %v439
        %v449 = vmax.f32 %v433, %v441
        %450 = vrot.lane.b32.xlu0 %v227, 96
        %v451 = vpop.permute.xlu0 %450
        %452 = vrot.lane.b32.xlu0 %v228, 96
        %v453 = vpop.permute.xlu0 %452
        %454 = vrot.lane.b32.xlu0 %v229, 96
        %v455 = vpop.permute.xlu0 %454
        %456 = vrot.lane.b32.xlu0 %v230, 96
        %v457 = vpop.permute.xlu0 %456
        %v462 = vmax.f32 %v446, %v451
        %v463 = vmax.f32 %v447, %v453
        %v464 = vmax.f32 %v448, %v455
        %v465 = vmax.f32 %v449, %v457
        %470 = vrot.lane.b32.xlu0 %v462, 8
        %v471 = vpop.permute.xlu0 %470
        %472 = vrot.lane.b32.xlu0 %v463, 8
        %v473 = vpop.permute.xlu0 %472
        %474 = vrot.lane.b32.xlu0 %v464, 8
        %v475 = vpop.permute.xlu0 %474
        %476 = vrot.lane.b32.xlu0 %v465, 8
        %v477 = vpop.permute.xlu0 %476
        %vm482 = vcmask 64512
        %v483 = vsel %vm482, %v320, %v471
        %v484 = vsel %vm482, %v325, %v473
        %v485 = vsel %vm482, %v330, %v475
        %v486 = vsel %vm482, %v335, %v477
        %vm487 = vcmask 97280
        %488 = vst.msk [vmem:[%s217] sm:$0xff] %vm487, %v483
        %489 = vst.msk [vmem:[%s217 + $0x8] sm:$0xff] %vm487, %v484
        %490 = vst.msk [vmem:[%s217 + $0x10] sm:$0xff] %vm487, %v485
        %491 = vst.msk [vmem:[%s217 + $0x18] sm:$0xff] %vm487, %v486
        %v492 = vsel %vm482, %v320, 0.0
        %v493 = vsel %vm482, %v325, 0.0
        %v494 = vadd.f32 %v492, %v493
        %v495 = vsel %vm482, %v330, 0.0
        %v496 = vadd.f32 %v494, %v495
        %v497 = vsel %vm482, %v335, 0.0
        %v498 = vadd.f32 %v496, %v497
        %v499 = vrot.slane %v498, 4
        %v500 = vadd.f32 %v498, %v499
        %v501 = vrot.slane %v500, 2
        %v502 = vadd.f32 %v500, %v501
        %v503 = vrot.slane %v502, 1
        %v504 = vadd.f32 %v502, %v503
        %v505 = vmul.f32 %v320, %v320
        %v506 = vmul.f32 %v325, %v325
        %v507 = vmul.f32 %v330, %v330
        %v508 = vmul.f32 %v335, %v335
        %v509 = vsel %vm482, %v505, 0.0
        %v510 = vsel %vm482, %v506, 0.0
        %v511 = vadd.f32 %v509, %v510
        %v512 = vsel %vm482, %v507, 0.0
        %v513 = vadd.f32 %v511, %v512
        %v514 = vsel %vm482, %v508, 0.0
        %v515 = vadd.f32 %v513, %v514
        %v516 = vrot.slane %v515, 4
        %v517 = vadd.f32 %v515, %v516
        %v518 = vrot.slane %v517, 2
        %v519 = vadd.f32 %v517, %v518
        %v520 = vrot.slane %v519, 1
        %v521 = vadd.f32 %v519, %v520
        %v522 = vld [vmem:[%s200] sm:$0x3]
        %vm523 = vcmask 1040384
        %v524 = vsel %vm523, %v504, %v521
        %v525 = vadd.f32 %v522, %v524
        %vm526 = vcmask 58368
        %527 = vst.msk [vmem:[%s200] sm:$0x3] %vm526, %v525
        %s528 = smul.u32 %s22, 2
        %s529 = sadd.s32 %s528, %s23
        %s530 = smul.u32 4, %s529
        %p531 = scmp.lt.s32.totalorder %s530, 15
        %s532 = scalar_select %p531, %s530, 15
        %s533 = smul.addr %s532, 8
        %s534 = scalar_lea.vmem %s2, %s533
        %s535 = sand.u32 %s119, 1
        %s536 = scalar_lea.sflag [#allocation3], %s535
        %s537 = sand.u32 %s119, 1
        %s538 = smul.addr %s537, 2
        %s539 = scalar_lea.vmem [#allocation2], %s538
        // Predicated region
        $region33: #{tpu_custom_call.1} parent=27 // pred_check
          %p540 = pneg %p103
        $region34: #{tpu_custom_call.1} parent=27 // pred_check_branch
          %542 = sbr.rel (%p540) target = $region36
        $region35: #{tpu_custom_call.1} parent=27 // pred_region
          %s543 = smul.u32 %s22, 2
          %s544 = sadd.s32 %s543, %s23
          %s545 = smul.u32 4, %s544
        $region36: #{tpu_custom_call.1} parent=27 // pred_fallthru
          _
        // Predicated region
        $region37: #{tpu_custom_call.1} parent=27 // pred_check
          %p546 = pneg %p129
        $region38: #{tpu_custom_call.1} parent=27 // pred_check_branch
          %548 = sbr.rel (%p546) target = $region40
        $region39: #{tpu_custom_call.1} parent=27 // pred_region
          %s550 = ssub.s32 32, 32
          %551 = vsyncadd %s536, %s550
          %s552 = smul.addr %s22, 32
          %s553 = scalar_lea.hbm %s3, %s552
          %s555 = sshll.u32 %s539, 4
          %s556 = int_to_ptr.vmem [resolvable:$true] %s555
          %558 = dma.vmem_to_hbm [thread:$0]  %s556, 32, %s553, %s536
        $region40: #{tpu_custom_call.1} parent=27 // pred_fallthru
          _
      $region28: #{tpu_custom_call.1} parent=5 // pred_fallthru
        _
      %p559 = scmp.le.s32.totalorder 2, %s13
      // Predicated region
      $region41: #{tpu_custom_call.1} parent=5 // pred_check
        %p560 = pneg %p559
      $region42: #{tpu_custom_call.1} parent=5 // pred_check_branch
        %562 = sbr.rel (%p560) target = $region44
      $region43: #{tpu_custom_call.1} parent=5 // pred_region
        %s563 = ssub.s32 %s13, 2
        // Predicated region
        $region45: #{tpu_custom_call.1} parent=43 // pred_check
          %p564 = pneg %p109
        $region46: #{tpu_custom_call.1} parent=43 // pred_check_branch
          %566 = sbr.rel (%p564) target = $region48
        $region47: #{tpu_custom_call.1} parent=43 // pred_region
          %s567 = smul.u32 %s24, 2
          %s568 = sadd.s32 %s567, %s25
          %s569 = smul.u32 4, %s568
          %p570 = scmp.lt.s32.totalorder %s569, 15
          %s571 = scalar_select %p570, %s569, 15
          %s572 = smul.addr %s571, 8
          %s573 = scalar_lea.vmem %s2, %s572
        $region48: #{tpu_custom_call.1} parent=43 // pred_fallthru
          _
        // Predicated region
        $region49: #{tpu_custom_call.1} parent=43 // pred_check
          %p574 = pneg %p135
        $region50: #{tpu_custom_call.1} parent=43 // pred_check_branch
          %576 = sbr.rel (%p574) target = $region52
        $region51: #{tpu_custom_call.1} parent=43 // pred_region
          %s577 = sand.u32 %s120, 1
          %s578 = scalar_lea.sflag [#allocation3], %s577
          %s579 = sand.u32 %s120, 1
          %s580 = smul.addr %s579, 2
          %s581 = scalar_lea.vmem [#allocation2], %s580
          %582 = dma.done %s578, 32
        $region52: #{tpu_custom_call.1} parent=43 // pred_fallthru
          _
      $region44: #{tpu_custom_call.1} parent=5 // pred_fallthru
        _
    $region6: #{tpu_custom_call.1} parent=1 // loop_footer
      %s17 = sadd.s32 1, %s13
    $region7: #{tpu_custom_call.1} parent=1 // loop_footer_branch
      %12 = sbr.rel target = $region3
    $region8: #{tpu_custom_call.1} parent=1 // loop_exit
      _
    %583 = vsyncpa [#allocation3], 1
    %s584 = scalar_lea.sflag [#allocation3], 1
    %585 = vsyncpa %s584, 1

</llo_original>
